<compile_context>
chip_gen: v6e
topology: v6e:2x2x1
jax: 0.10.0
libtpu: 0.0.40
codegen_flags: <defaults>
</compile_context>

<pallas_src>
import math
from functools import partial

import numpy as np
import jax
import jax.numpy as jnp
from jax.experimental import pallas as pl
from jax.experimental.pallas import tpu as pltpu


def _round_up(x: int, m: int) -> int:
    return ((x + m - 1) // m) * m


def _sincos_kernel(pos_ref, inv_freq_ref, out_ref, *, padding_idx, half):
    # pos_ref:      (TR, 1)  float32  position ids for this row tile
    # inv_freq_ref: (1, H)   float32  (H = D // 2)
    # out_ref:      (TR, D)  float32
    pos = pos_ref[...]                                  # (TR, 1)
    inv_freq = inv_freq_ref[...]                        # (1, H)
    ang = pos * inv_freq                                # (TR, H) broadcast (VPU)

    # In M2M100 only the table row at padding_idx is zeroed; valid positions are
    # always >= padding_idx + 1, so "zero row" <=> pos == padding_idx exactly.
    valid = pos != float(padding_idx)                   # (TR, 1)

    sin_half = jnp.where(valid, jnp.sin(ang), 0.0)      # (TR, H)
    cos_half = jnp.where(valid, jnp.cos(ang), 0.0)      # (TR, H)

    if half % 128 == 0:
        # Lane-aligned half writes: no (TR, D) concat temporary, unmasked vst.
        out_ref[:, :half] = sin_half.astype(out_ref.dtype)
        out_ref[:, half:] = cos_half.astype(out_ref.dtype)
    else:
        # Tiny / unaligned D: single full-width store (stays correct; masked
        # stores are unavoidable at lane widths < 128 anyway).
        out_ref[...] = jnp.concatenate([sin_half, cos_half], axis=-1).astype(out_ref.dtype)


def m2m_position_embeddings_from_attention_mask(
    attention_mask: jnp.ndarray,       # (B, max_seq) 0/1 (any nonzero counts as 1)
    seq_len: int,                      # = input_ids.shape[-1]
    *,
    embedding_dim: int,
    padding_idx: int = 1,
    past_key_values_length: int = 0,
    fill_token: int = 12345,
    max_row_tile: int = 512,
) -> jnp.ndarray:
    assert fill_token != padding_idx, "fill_token must differ from padding_idx"
    assert embedding_dim % 2 == 0 and embedding_dim >= 4, (
        "embedding_dim must be even and >= 4 (half-1 appears in a denominator)"
    )
    # TODO(synk): odd embedding_dim would need a trailing zero column like torch's get_embedding.

    cut = attention_mask[:, :seq_len]                     # glue: the slice
    B, S = cut.shape
    half = embedding_dim // 2

    # --- position ids in plain JAX (cheap glue; removes the in-kernel S x S cumsum) ---
    # fake_ids = cut*fill + (1-cut)*pad  !=  pad   <=>   cut != 0
    mask = (cut != 0).astype(jnp.int32)                   # (B, S)
    pos = (jnp.cumsum(mask, axis=1, dtype=jnp.int32) + past_key_values_length) * mask + padding_idx
    N = B * S
    pos = pos.astype(jnp.float32).reshape(N, 1)           # exact for positions < 2^24

    # --- row tiling: multiple of 8 sublanes, block capped at ~2 MiB of output ---
    tile_cap = max(8, (2 * 1024 * 1024) // (embedding_dim * 4))
    TR = min(max_row_tile, tile_cap, _round_up(N, 8))
    TR = max(8, (TR // 8) * 8)
    N_pad = _round_up(N, TR)
    if N_pad != N:
        # pad with padding_idx so padded rows are treated as "masked" (zeroed)
        pad_rows = jnp.full((N_pad - N, 1), float(padding_idx), dtype=jnp.float32)
        pos = jnp.concatenate([pos, pad_rows], axis=0)

    # Frequencies exactly as in M2M100SinusoidalPositionalEmbedding.get_embedding
    emb_scale = math.log(10000.0) / (half - 1)
    inv_freq = jnp.exp(
        jnp.arange(half, dtype=jnp.float32) * -emb_scale
    ).reshape(1, half)

    kernel = partial(_sincos_kernel, padding_idx=padding_idx, half=half)

    out_flat = pl.pallas_call(
        kernel,
        out_shape=jax.ShapeDtypeStruct((N_pad, embedding_dim), jnp.float32),
        grid=(N_pad // TR,),
        in_specs=[
            pl.BlockSpec((TR, 1), lambda i: (i, 0)),       # just this tile's rows
            pl.BlockSpec((1, half), lambda i: (0, 0)),     # frequencies (resident)
        ],
        out_specs=pl.BlockSpec((TR, embedding_dim), lambda i: (i, 0)),
        compiler_params=pltpu.CompilerParams(dimension_semantics=("parallel",)),
    )(pos, inv_freq)

    return out_flat[:N].reshape(B, S, embedding_dim)


def _reference_numpy(attention_mask, seq_len, embedding_dim, padding_idx, past, fill_token):
    """Pure numpy replica of the torch module (mask -> fake ids -> sinusoidal lookup)."""
    cut = np.asarray(attention_mask)[:, :seq_len].astype(np.int64)
    fake = cut * fill_token + (1 - cut) * padding_idx
    m = (fake != padding_idx).astype(np.int64)
    pos = (np.cumsum(m, axis=1) + past) * m + padding_idx
    num_emb = int(pos.max()) + 1
    half = embedding_dim // 2
    scale = math.log(10000.0) / (half - 1)
    inv_freq = np.exp(np.arange(half, dtype=np.float32) * -np.float32(scale)).astype(np.float32)
    ang = np.arange(num_emb, dtype=np.float32)[:, None] * inv_freq[None, :]
    table = np.concatenate([np.sin(ang), np.cos(ang)], axis=1).astype(np.float32)
    table[padding_idx, :] = 0.0
    return table[pos]


def _run_case(key, B, MAX_S, S, D, padding_idx, past, fill_token, max_row_tile):
    lengths = jax.random.randint(key, (B,), minval=2, maxval=S + 1)
    attn_mask = (jnp.arange(MAX_S)[None, :] < lengths[:, None]).astype(jnp.int32)

    out = m2m_position_embeddings_from_attention_mask(
        attn_mask,
        S,
        embedding_dim=D,
        padding_idx=padding_idx,
        past_key_values_length=past,
        fill_token=fill_token,
        max_row_tile=max_row_tile,
    )
    out = jax.block_until_ready(out)

    ref = _reference_numpy(attn_mask, S, D, padding_idx, past, fill_token)
    assert out.shape == (B, S, D), out.shape
    assert np.allclose(np.asarray(out), ref, rtol=1e-5, atol=1e-5), (
        f"mismatch vs numpy reference (B={B}, S={S}, D={D})"
    )


if __name__ == "__main__":
    key = jax.random.PRNGKey(0)
    k1, k2 = jax.random.split(key)

    # Case 1: small shapes matching the module's typical test config
    # (tiny D -> single-store path, single grid step).
    _run_case(k1, B=2, MAX_S=16, S=8, D=32,
              padding_idx=1, past=2, fill_token=12345, max_row_tile=512)

    # Case 2: lane-aligned half (D/2 multiple of 128), multi-step grid and
    # row padding exercised (N = 200 rows, TR = 64 -> grid of 4, 56 pad rows).
    _run_case(k2, B=2, MAX_S=128, S=100, D=256,
              padding_idx=1, past=0, fill_token=12345, max_row_tile=64)

    print("KERNEL_OK")
</pallas_src>

<mosaic_0001>
module attributes {stable_mosaic.version = 11 : i64} {
  func.func @_sincos_kernel(%arg0: i32, %arg1: memref<16x1xf32, #tpu.memory_space<vmem>>, %arg2: memref<1x16xf32, #tpu.memory_space<vmem>>, %arg3: memref<16x32xf32, #tpu.memory_space<vmem>>) attributes {dimension_semantics = [#tpu.dimension_semantics<parallel>], iteration_bounds = array<i64: 1>, scalar_prefetch = 0 : i64, scratch_operands = 0 : i64, tpu.core_type = #tpu.core_type<tc>, window_params = [{transform_indices = @transform_0, window_bounds = array<i64: 16, 1>}, {pipeline_mode = #tpu.pipeline_mode<synchronous>, transform_indices = @transform_1, window_bounds = array<i64: 1, 16>}, {transform_indices = @transform_2, window_bounds = array<i64: 16, 32>}]} {
    %c0 = arith.constant 0 : index
    %c0_0 = arith.constant 0 : index
    %0 = vector.load %arg1[%c0, %c0_0] : memref<16x1xf32, #tpu.memory_space<vmem>>, vector<16x1xf32>
    %c0_1 = arith.constant 0 : index
    %c0_2 = arith.constant 0 : index
    %1 = vector.load %arg2[%c0_1, %c0_2] : memref<1x16xf32, #tpu.memory_space<vmem>>, vector<1x16xf32>
    %2 = vector.broadcast %0 : vector<16x1xf32> to vector<16x16xf32>
    %3 = vector.broadcast %1 : vector<1x16xf32> to vector<16x16xf32>
    %4 = arith.mulf %2, %3 : vector<16x16xf32>
    %cst = arith.constant 1.000000e+00 : f32
    %5 = vector.broadcast %cst : f32 to vector<16x1xf32>
    %6 = arith.cmpf one, %0, %5 : vector<16x1xf32>
    %7 = math.sin %4 : vector<16x16xf32>
    %cst_3 = arith.constant 0.000000e+00 : f32
    %8 = vector.shape_cast %6 : vector<16x1xi1> to vector<16x1xi1>
    %9 = vector.broadcast %8 : vector<16x1xi1> to vector<16x16xi1>
    %10 = vector.broadcast %cst_3 : f32 to vector<16x16xf32>
    %11 = arith.select %9, %7, %10 : vector<16x16xi1>, vector<16x16xf32>
    %12 = math.cos %4 : vector<16x16xf32>
    %cst_4 = arith.constant 0.000000e+00 : f32
    %13 = vector.shape_cast %6 : vector<16x1xi1> to vector<16x1xi1>
    %14 = vector.broadcast %13 : vector<16x1xi1> to vector<16x16xi1>
    %15 = vector.broadcast %cst_4 : f32 to vector<16x16xf32>
    %16 = arith.select %14, %12, %15 : vector<16x16xi1>, vector<16x16xf32>
    %17 = tpu.concatenate %11, %16 in 1 : vector<16x16xf32>, vector<16x16xf32> -> vector<16x32xf32>
    %c0_5 = arith.constant 0 : index
    %c0_6 = arith.constant 0 : index
    %18 = vector.load %arg3[%c0_5, %c0_6] : memref<16x32xf32, #tpu.memory_space<vmem>>, vector<16x32xf32>
    tpu.vector_store %arg3[%c0_5, %c0_6], %17 {strides = array<i32>} : memref<16x32xf32, #tpu.memory_space<vmem>>, vector<16x32xf32>,
    return
  }
  func.func @transform_0(%arg0: i32) -> (i32, i32) {
    %c0_i32 = arith.constant 0 : i32
    %c0_i32_0 = arith.constant 0 : i32
    return %arg0, %c0_i32 : i32, i32
  }
  func.func @transform_1(%arg0: i32) -> (i32, i32) {
    %c0_i32 = arith.constant 0 : i32
    %c0_i32_0 = arith.constant 0 : i32
    %c0_i32_1 = arith.constant 0 : i32
    return %c0_i32, %c0_i32_0 : i32, i32
  }
  func.func @transform_2(%arg0: i32) -> (i32, i32) {
    %c0_i32 = arith.constant 0 : i32
    %c0_i32_0 = arith.constant 0 : i32
    return %arg0, %c0_i32 : i32, i32
  }
}

</mosaic_0001>

<llo_original>
// kernel: tpu_custom_call.1
$region0: #{tpu_custom_call.1}
  #allocation0 [shape = 'u32[]', space=smem, size = 0x4, offset = 0x4, fixed_abs, tag = 'smem constant byte address 0x4 - core index']
  #allocation1 [shape = 'u32[144,128]{1,0:T(1,128)}', space=vmem, size = 0x12000, scoped, tag = 'internal scratch']
  %s0 = inlined_call_operand.vmem [shape: f32[16,1], index: 0, kind: input, shape index: {}]
  %s1 = inlined_call_operand.vmem [shape: f32[1,16], index: 1, kind: input, shape index: {}]
  %s2 = inlined_call_operand.hbm [shape: f32[16,32], index: 2, kind: output, shape index: {}]
  %s3 = sld [smem:[#allocation0]]
  $region18: #{tpu_custom_call.1} parent=0
    _
  %s5 = ssub.s32 1, %s3
  %s6 = scalar_select 0, %s5, %s3
  $region1: #{tpu_custom_call.1} parent=0
    #allocation2 [shape = 'u8[8192]{0}', space=vmem, size = 0x2000, scoped, tag = 'output window, operand 0, single buffered']
    #allocation3 [shape = 's32[1]{0}', space=sflag, size = 0x4, scoped, tag = 'scoped memory for tpu_custom_call.1']
    %7 = vsyncpa [#allocation3], 0
    // Predicated region
    $region2: #{tpu_custom_call.1} parent=1 // pred_check
      _
    $region3: #{tpu_custom_call.1} parent=1 // pred_check_branch
      %9 = sbr.rel (0) target = $region5
    $region4: #{tpu_custom_call.1} parent=1 // pred_region
      _
    $region5: #{tpu_custom_call.1} parent=1 // pred_fallthru
      _
    // Predicated region
    $region6: #{tpu_custom_call.1} parent=1 // pred_check
      _
    $region7: #{tpu_custom_call.1} parent=1 // pred_check_branch
      %11 = sbr.rel (0) target = $region9
    $region8: #{tpu_custom_call.1} parent=1 // pred_region
      _
    $region9: #{tpu_custom_call.1} parent=1 // pred_fallthru
      _
    %v12 = vld [vmem:[%s0] sm:$0xff]
    %v13 = vld [vmem:[%s0 + $0x8] sm:$0xff]
    %v14 = vld [vmem:[%s1] sm:$0x1]
    %16 = vset.pattern.permute.xlu0 0
    %17 = vperm.xlu0 %16, %v12
    %v18 = vpop.permute.xlu0 %17
    %21 = vset.pattern.permute.xlu0 0
    %22 = vperm.xlu0 %21, %v13
    %v23 = vpop.permute.xlu0 %22
    %v26 = vlaneseq
    %v27 = vshrl.u32 %v26, 7
    %v28 = vsub.s32 0, %v27
    %v29 = vrot.slane %v14, %v28
    %v31 = vmul.f32 %v18, %v29
    %v32 = vmul.f32 %v23, %v29
    %vm33 = vcmp.ne.f32.partialorder %v12, 1.0
    %vm34 = vcmp.ne.f32.partialorder %v13, 1.0
    %v35 = vand.u32 2147483647, %v31
    %vm36 = vcmp.le.f32.partialorder %v35, 0.7853982
    %vm37 = vcmp.lt.s32.totalorder %v31, 0
    %v38 = vand.u32 %v31, 2139095040
    %v39 = vshrl.u32 %v38, 23
    %v40 = vsub.s32 %v39, 127
    %v41 = vand.u32 2147483647, %v31
    %v42 = vand.u32 %v41, 8388607
    %v43 = vor.u32 %v42, 8388608
    %v44 = vsub.s32 0, %v43
    %v45 = vadd.s32 %v40, 1
    %vm46 = vcmp.gt.s32.totalorder %v45, 0
    %v47 = vsel %vm46, %v45, 0
    %v48 = vshrl.u32 %v47, 5
    %v49 = vand.u32 %v47, 31
    %v50 = vsub.s32 32, %v49
    %v51 = vshrl.u32 683565275, %v50
    %v52 = vshll.u32 683565275, %v49
    %v53 = vshrl.u32 2475754826, %v50
    %v54 = vor.u32 %v52, %v53
    %v55 = vshll.u32 2475754826, %v49
    %v56 = vshrl.u32 2131351028, %v50
    %v57 = vor.u32 %v55, %v56
    %v58 = vshll.u32 2131351028, %v49
    %v59 = vshrl.u32 2102212464, %v50
    %v60 = vor.u32 %v58, %v59
    %v61 = vshll.u32 2102212464, %v49
    %v62 = vshrl.u32 920167782, %v50
    %v63 = vor.u32 %v61, %v62
    %v64 = vshll.u32 920167782, %v49
    %v65 = vshrl.u32 1326507024, %v50
    %v66 = vor.u32 %v64, %v65
    %vm67 = vcmp.lt.s32.totalorder %v48, 1
    %vm68 = vcmp.lt.s32.totalorder %v48, 2
    %vm69 = vcmp.lt.s32.totalorder %v48, 3
    %vm70 = vcmp.lt.s32.totalorder %v48, 4
    %v71 = vsel %vm67, %v51, %v54
    %v72 = vsel %vm70, %v60, 2102212464
    %v73 = vsel %vm69, %v57, %v72
    %v74 = vsel %vm68, %v71, %v73
    %v75 = vsel %vm67, %v54, %v57
    %v76 = vsel %vm70, %v63, 920167782
    %v77 = vsel %vm69, %v60, %v76
    %v78 = vsel %vm68, %v75, %v77
    %v79 = vsel %vm67, %v57, %v60
    %v80 = vsel %vm70, %v66, 1326507024
    %v81 = vsel %vm69, %v63, %v80
    %v82 = vsel %vm68, %v79, %v81
    %v83 = vshll.u32 %v43, 8
    %v84 = vmul.u32.u64.compose %v83, %v82
    %v85 = vextract.low.u32 %v84
    %v86 = vextract.high.u32 %v84
    %v87 = vmul.u32.u64.compose %v83, %v78
    %v88 = vextract.low.u32 %v87
    %v89 = vextract.high.u32 %v87
    %v90 = vmul.u32 %v83, %v74
    %v91 = vadd.s32 %v86, %v88
    %vm92 = vc.u32 %v86, %v88
    %v93 = vadd.s32 %v89, 1
    %v94 = vsel %vm92, %v93, %v89
    %v95 = vadd.s32 %v90, %v94
    %v96 = vadd.s32 %v95, 536870912
    %v97 = vshrl.u32 %v96, 30
    %v98 = vshll.u32 %v97, 30
    %v99 = vsub.s32 %v95, %v98
    %vm100 = vcmp.lt.s32.totalorder %v99, 0
    %v101 = vsub.s32 0, %v99
    %v102 = vsel %vm100, %v101, %v99
    %v103 = vclz %v102
    %v104 = vsub.s32 %v103, 2
    %vm105 = vcmp.gt.s32.totalorder 0, %v104
    %v106 = vsel %vm105, 0, %v104
    %v107 = vsub.s32 32, %v106
    %v108 = vshll.u32 %v99, %v106
    %v109 = vshrl.u32 %v91, %v107
    %v110 = vor.u32 %v108, %v109
    %v111 = vsub.s32 4294967266, %v106
    %v112 = vadd.s32 %v111, 127
    %v113 = vshll.u32 %v112, 23
    %v114 = vor.u32 4788187, %v113
    %v115 = vand.u32 2147483647, %v114
    %v117 = vcvt.s32.f32 %v110
    %v118 = vmul.f32 %v117, %v115
    %v119 = vxor.u32 %v118, 2147483648
    %v120 = vsel %vm37, %v119, %v118
    %v121 = vsub.s32 4, %v97
    %v122 = vsel %vm37, %v121, %v97
    %v123 = vsel %vm36, %v31, %v120
    %v124 = vsel %vm36, 0, %v122
    %v125 = vcosq.f32.pop %v123
    %v126 = vsinq.f32.pop %v123
    %vm127 = vweird.f32 %v31
    %v128 = vadd.s32 %v124, 3
    %v129 = vand.u32 %v128, 3
    %vm130 = vcmp.lt.s32.totalorder %v129, 2
    %vm131 = vcmp.eq.s32.totalorder %v129, 0
    %v132 = vxor.u32 %v126, 2147483648
    %v133 = vsel %vm131, %v125, %v132
    %vm134 = vcmp.eq.s32.totalorder %v129, 2
    %v135 = vxor.u32 %v125, 2147483648
    %v136 = vsel %vm134, %v135, %v126
    %v137 = vsel %vm130, %v133, %v136
    %v138 = vsel %vm127, nan, %v137
    %v139 = vand.u32 2147483647, %v32
    %vm140 = vcmp.le.f32.partialorder %v139, 0.7853982
    %vm141 = vcmp.lt.s32.totalorder %v32, 0
    %v142 = vand.u32 %v32, 2139095040
    %v143 = vshrl.u32 %v142, 23
    %v144 = vsub.s32 %v143, 127
    %v145 = vand.u32 2147483647, %v32
    %v146 = vand.u32 %v145, 8388607
    %v147 = vor.u32 %v146, 8388608
    %v148 = vsub.s32 0, %v147
    %v149 = vadd.s32 %v144, 1
    %vm150 = vcmp.gt.s32.totalorder %v149, 0
    %v151 = vsel %vm150, %v149, 0
    %v152 = vshrl.u32 %v151, 5
    %v153 = vand.u32 %v151, 31
    %v154 = vsub.s32 32, %v153
    %v155 = vshrl.u32 683565275, %v154
    %v156 = vshll.u32 683565275, %v153
    %v157 = vshrl.u32 2475754826, %v154
    %v158 = vor.u32 %v156, %v157
    %v159 = vshll.u32 2475754826, %v153
    %v160 = vshrl.u32 2131351028, %v154
    %v161 = vor.u32 %v159, %v160
    %v162 = vshll.u32 2131351028, %v153
    %v163 = vshrl.u32 2102212464, %v154
    %v164 = vor.u32 %v162, %v163
    %v165 = vshll.u32 2102212464, %v153
    %v166 = vshrl.u32 920167782, %v154
    %v167 = vor.u32 %v165, %v166
    %v168 = vshll.u32 920167782, %v153
    %v169 = vshrl.u32 1326507024, %v154
    %v170 = vor.u32 %v168, %v169
    %vm171 = vcmp.lt.s32.totalorder %v152, 1
    %vm172 = vcmp.lt.s32.totalorder %v152, 2
    %vm173 = vcmp.lt.s32.totalorder %v152, 3
    %vm174 = vcmp.lt.s32.totalorder %v152, 4
    %v175 = vsel %vm171, %v155, %v158
    %v176 = vsel %vm174, %v164, 2102212464
    %v177 = vsel %vm173, %v161, %v176
    %v178 = vsel %vm172, %v175, %v177
    %v179 = vsel %vm171, %v158, %v161
    %v180 = vsel %vm174, %v167, 920167782
    %v181 = vsel %vm173, %v164, %v180
    %v182 = vsel %vm172, %v179, %v181
    %v183 = vsel %vm171, %v161, %v164
    %v184 = vsel %vm174, %v170, 1326507024
    %v185 = vsel %vm173, %v167, %v184
    %v186 = vsel %vm172, %v183, %v185
    %v187 = vshll.u32 %v147, 8
    %v188 = vmul.u32.u64.compose %v187, %v186
    %v189 = vextract.low.u32 %v188
    %v190 = vextract.high.u32 %v188
    %v191 = vmul.u32.u64.compose %v187, %v182
    %v192 = vextract.low.u32 %v191
    %v193 = vextract.high.u32 %v191
    %v194 = vmul.u32 %v187, %v178
    %v195 = vadd.s32 %v190, %v192
    %vm196 = vc.u32 %v190, %v192
    %v197 = vadd.s32 %v193, 1
    %v198 = vsel %vm196, %v197, %v193
    %v199 = vadd.s32 %v194, %v198
    %v200 = vadd.s32 %v199, 536870912
    %v201 = vshrl.u32 %v200, 30
    %v202 = vshll.u32 %v201, 30
    %v203 = vsub.s32 %v199, %v202
    %vm204 = vcmp.lt.s32.totalorder %v203, 0
    %v205 = vsub.s32 0, %v203
    %v206 = vsel %vm204, %v205, %v203
    %v207 = vclz %v206
    %v208 = vsub.s32 %v207, 2
    %vm209 = vcmp.gt.s32.totalorder 0, %v208
    %v210 = vsel %vm209, 0, %v208
    %v211 = vsub.s32 32, %v210
    %v212 = vshll.u32 %v203, %v210
    %v213 = vshrl.u32 %v195, %v211
    %v214 = vor.u32 %v212, %v213
    %v215 = vsub.s32 4294967266, %v210
    %v216 = vadd.s32 %v215, 127
    %v217 = vshll.u32 %v216, 23
    %v218 = vor.u32 4788187, %v217
    %v219 = vand.u32 2147483647, %v218
    %v221 = vcvt.s32.f32 %v214
    %v222 = vmul.f32 %v221, %v219
    %v223 = vxor.u32 %v222, 2147483648
    %v224 = vsel %vm141, %v223, %v222
    %v225 = vsub.s32 4, %v201
    %v226 = vsel %vm141, %v225, %v201
    %v227 = vsel %vm140, %v32, %v224
    %v228 = vsel %vm140, 0, %v226
    %v229 = vcosq.f32.pop %v227
    %v230 = vsinq.f32.pop %v227
    %vm231 = vweird.f32 %v32
    %v232 = vadd.s32 %v228, 3
    %v233 = vand.u32 %v232, 3
    %vm234 = vcmp.lt.s32.totalorder %v233, 2
    %vm235 = vcmp.eq.s32.totalorder %v233, 0
    %v236 = vxor.u32 %v230, 2147483648
    %v237 = vsel %vm235, %v229, %v236
    %vm238 = vcmp.eq.s32.totalorder %v233, 2
    %v239 = vxor.u32 %v229, 2147483648
    %v240 = vsel %vm238, %v239, %v230
    %v241 = vsel %vm234, %v237, %v240
    %v242 = vsel %vm231, nan, %v241
    %v243 = vsel %vm33, 1, 0
    %v244 = vsel %vm34, 1, 0
    %245 = vset.pattern.permute.xlu0 0
    %246 = vperm.xlu0 %245, %v243
    %v247 = vpop.permute.xlu0 %246
    %248 = vset.pattern.permute.xlu0 0
    %249 = vperm.xlu0 %248, %v244
    %v250 = vpop.permute.xlu0 %249
    %vm251 = vcmp.eq.s32.totalorder %v247, 1
    %vm252 = vcmp.eq.s32.totalorder %v250, 1
    %v253 = vsel %vm251, %v138, 0.0
    %v254 = vsel %vm252, %v242, 0.0
    %v255 = vand.u32 2147483647, %v31
    %vm256 = vcmp.le.f32.partialorder %v255, 0.7853982
    %vm257 = vcmp.lt.s32.totalorder %v31, 0
    %v258 = vand.u32 %v31, 2139095040
    %v259 = vshrl.u32 %v258, 23
    %v260 = vsub.s32 %v259, 127
    %v261 = vand.u32 2147483647, %v31
    %v262 = vand.u32 %v261, 8388607
    %v263 = vor.u32 %v262, 8388608
    %v264 = vsub.s32 0, %v263
    %v265 = vadd.s32 %v260, 1
    %vm266 = vcmp.gt.s32.totalorder %v265, 0
    %v267 = vsel %vm266, %v265, 0
    %v268 = vshrl.u32 %v267, 5
    %v269 = vand.u32 %v267, 31
    %v270 = vsub.s32 32, %v269
    %v271 = vshrl.u32 683565275, %v270
    %v272 = vshll.u32 683565275, %v269
    %v273 = vshrl.u32 2475754826, %v270
    %v274 = vor.u32 %v272, %v273
    %v275 = vshll.u32 2475754826, %v269
    %v276 = vshrl.u32 2131351028, %v270
    %v277 = vor.u32 %v275, %v276
    %v278 = vshll.u32 2131351028, %v269
    %v279 = vshrl.u32 2102212464, %v270
    %v280 = vor.u32 %v278, %v279
    %v281 = vshll.u32 2102212464, %v269
    %v282 = vshrl.u32 920167782, %v270
    %v283 = vor.u32 %v281, %v282
    %v284 = vshll.u32 920167782, %v269
    %v285 = vshrl.u32 1326507024, %v270
    %v286 = vor.u32 %v284, %v285
    %vm287 = vcmp.lt.s32.totalorder %v268, 1
    %vm288 = vcmp.lt.s32.totalorder %v268, 2
    %vm289 = vcmp.lt.s32.totalorder %v268, 3
    %vm290 = vcmp.lt.s32.totalorder %v268, 4
    %v291 = vsel %vm287, %v271, %v274
    %v292 = vsel %vm290, %v280, 2102212464
    %v293 = vsel %vm289, %v277, %v292
    %v294 = vsel %vm288, %v291, %v293
    %v295 = vsel %vm287, %v274, %v277
    %v296 = vsel %vm290, %v283, 920167782
    %v297 = vsel %vm289, %v280, %v296
    %v298 = vsel %vm288, %v295, %v297
    %v299 = vsel %vm287, %v277, %v280
    %v300 = vsel %vm290, %v286, 1326507024
    %v301 = vsel %vm289, %v283, %v300
    %v302 = vsel %vm288, %v299, %v301
    %v303 = vshll.u32 %v263, 8
    %v304 = vmul.u32.u64.compose %v303, %v302
    %v305 = vextract.low.u32 %v304
    %v306 = vextract.high.u32 %v304
    %v307 = vmul.u32.u64.compose %v303, %v298
    %v308 = vextract.low.u32 %v307
    %v309 = vextract.high.u32 %v307
    %v310 = vmul.u32 %v303, %v294
    %v311 = vadd.s32 %v306, %v308
    %vm312 = vc.u32 %v306, %v308
    %v313 = vadd.s32 %v309, 1
    %v314 = vsel %vm312, %v313, %v309
    %v315 = vadd.s32 %v310, %v314
    %v316 = vadd.s32 %v315, 536870912
    %v317 = vshrl.u32 %v316, 30
    %v318 = vshll.u32 %v317, 30
    %v319 = vsub.s32 %v315, %v318
    %vm320 = vcmp.lt.s32.totalorder %v319, 0
    %v321 = vsub.s32 0, %v319
    %v322 = vsel %vm320, %v321, %v319
    %v323 = vclz %v322
    %v324 = vsub.s32 %v323, 2
    %vm325 = vcmp.gt.s32.totalorder 0, %v324
    %v326 = vsel %vm325, 0, %v324
    %v327 = vsub.s32 32, %v326
    %v328 = vshll.u32 %v319, %v326
    %v329 = vshrl.u32 %v311, %v327
    %v330 = vor.u32 %v328, %v329
    %v331 = vsub.s32 4294967266, %v326
    %v332 = vadd.s32 %v331, 127
    %v333 = vshll.u32 %v332, 23
    %v334 = vor.u32 4788187, %v333
    %v335 = vand.u32 2147483647, %v334
    %v337 = vcvt.s32.f32 %v330
    %v338 = vmul.f32 %v337, %v335
    %v339 = vxor.u32 %v338, 2147483648
    %v340 = vsel %vm257, %v339, %v338
    %v341 = vsub.s32 4, %v317
    %v342 = vsel %vm257, %v341, %v317
    %v343 = vsel %vm256, %v31, %v340
    %v344 = vsel %vm256, 0, %v342
    %v345 = vcosq.f32.pop %v343
    %v346 = vsinq.f32.pop %v343
    %vm347 = vweird.f32 %v31
    %v348 = vand.u32 %v344, 3
    %vm349 = vcmp.lt.s32.totalorder %v348, 2
    %vm350 = vcmp.eq.s32.totalorder %v348, 0
    %v351 = vxor.u32 %v346, 2147483648
    %v352 = vsel %vm350, %v345, %v351
    %vm353 = vcmp.eq.s32.totalorder %v348, 2
    %v354 = vxor.u32 %v345, 2147483648
    %v355 = vsel %vm353, %v354, %v346
    %v356 = vsel %vm349, %v352, %v355
    %v357 = vsel %vm347, nan, %v356
    %v358 = vand.u32 2147483647, %v32
    %vm359 = vcmp.le.f32.partialorder %v358, 0.7853982
    %vm360 = vcmp.lt.s32.totalorder %v32, 0
    %v361 = vand.u32 %v32, 2139095040
    %v362 = vshrl.u32 %v361, 23
    %v363 = vsub.s32 %v362, 127
    %v364 = vand.u32 2147483647, %v32
    %v365 = vand.u32 %v364, 8388607
    %v366 = vor.u32 %v365, 8388608
    %v367 = vsub.s32 0, %v366
    %v368 = vadd.s32 %v363, 1
    %vm369 = vcmp.gt.s32.totalorder %v368, 0
    %v370 = vsel %vm369, %v368, 0
    %v371 = vshrl.u32 %v370, 5
    %v372 = vand.u32 %v370, 31
    %v373 = vsub.s32 32, %v372
    %v374 = vshrl.u32 683565275, %v373
    %v375 = vshll.u32 683565275, %v372
    %v376 = vshrl.u32 2475754826, %v373
    %v377 = vor.u32 %v375, %v376
    %v378 = vshll.u32 2475754826, %v372
    %v379 = vshrl.u32 2131351028, %v373
    %v380 = vor.u32 %v378, %v379
    %v381 = vshll.u32 2131351028, %v372
    %v382 = vshrl.u32 2102212464, %v373
    %v383 = vor.u32 %v381, %v382
    %v384 = vshll.u32 2102212464, %v372
    %v385 = vshrl.u32 920167782, %v373
    %v386 = vor.u32 %v384, %v385
    %v387 = vshll.u32 920167782, %v372
    %v388 = vshrl.u32 1326507024, %v373
    %v389 = vor.u32 %v387, %v388
    %vm390 = vcmp.lt.s32.totalorder %v371, 1
    %vm391 = vcmp.lt.s32.totalorder %v371, 2
    %vm392 = vcmp.lt.s32.totalorder %v371, 3
    %vm393 = vcmp.lt.s32.totalorder %v371, 4
    %v394 = vsel %vm390, %v374, %v377
    %v395 = vsel %vm393, %v383, 2102212464
    %v396 = vsel %vm392, %v380, %v395
    %v397 = vsel %vm391, %v394, %v396
    %v398 = vsel %vm390, %v377, %v380
    %v399 = vsel %vm393, %v386, 920167782
    %v400 = vsel %vm392, %v383, %v399
    %v401 = vsel %vm391, %v398, %v400
    %v402 = vsel %vm390, %v380, %v383
    %v403 = vsel %vm393, %v389, 1326507024
    %v404 = vsel %vm392, %v386, %v403
    %v405 = vsel %vm391, %v402, %v404
    %v406 = vshll.u32 %v366, 8
    %v407 = vmul.u32.u64.compose %v406, %v405
    %v408 = vextract.low.u32 %v407
    %v409 = vextract.high.u32 %v407
    %v410 = vmul.u32.u64.compose %v406, %v401
    %v411 = vextract.low.u32 %v410
    %v412 = vextract.high.u32 %v410
    %v413 = vmul.u32 %v406, %v397
    %v414 = vadd.s32 %v409, %v411
    %vm415 = vc.u32 %v409, %v411
    %v416 = vadd.s32 %v412, 1
    %v417 = vsel %vm415, %v416, %v412
    %v418 = vadd.s32 %v413, %v417
    %v419 = vadd.s32 %v418, 536870912
    %v420 = vshrl.u32 %v419, 30
    %v421 = vshll.u32 %v420, 30
    %v422 = vsub.s32 %v418, %v421
    %vm423 = vcmp.lt.s32.totalorder %v422, 0
    %v424 = vsub.s32 0, %v422
    %v425 = vsel %vm423, %v424, %v422
    %v426 = vclz %v425
    %v427 = vsub.s32 %v426, 2
    %vm428 = vcmp.gt.s32.totalorder 0, %v427
    %v429 = vsel %vm428, 0, %v427
    %v430 = vsub.s32 32, %v429
    %v431 = vshll.u32 %v422, %v429
    %v432 = vshrl.u32 %v414, %v430
    %v433 = vor.u32 %v431, %v432
    %v434 = vsub.s32 4294967266, %v429
    %v435 = vadd.s32 %v434, 127
    %v436 = vshll.u32 %v435, 23
    %v437 = vor.u32 4788187, %v436
    %v438 = vand.u32 2147483647, %v437
    %v440 = vcvt.s32.f32 %v433
    %v441 = vmul.f32 %v440, %v438
    %v442 = vxor.u32 %v441, 2147483648
    %v443 = vsel %vm360, %v442, %v441
    %v444 = vsub.s32 4, %v420
    %v445 = vsel %vm360, %v444, %v420
    %v446 = vsel %vm359, %v32, %v443
    %v447 = vsel %vm359, 0, %v445
    %v448 = vcosq.f32.pop %v446
    %v449 = vsinq.f32.pop %v446
    %vm450 = vweird.f32 %v32
    %v451 = vand.u32 %v447, 3
    %vm452 = vcmp.lt.s32.totalorder %v451, 2
    %vm453 = vcmp.eq.s32.totalorder %v451, 0
    %v454 = vxor.u32 %v449, 2147483648
    %v455 = vsel %vm453, %v448, %v454
    %vm456 = vcmp.eq.s32.totalorder %v451, 2
    %v457 = vxor.u32 %v448, 2147483648
    %v458 = vsel %vm456, %v457, %v449
    %v459 = vsel %vm452, %v455, %v458
    %v460 = vsel %vm450, nan, %v459
    %v461 = vsel %vm251, %v357, 0.0
    %v462 = vsel %vm252, %v460, 0.0
    %465 = vrot.lane.b32.xlu0 %v461, 16
    %v466 = vpop.permute.xlu0 %465
    %467 = vrot.lane.b32.xlu0 %v462, 16
    %v468 = vpop.permute.xlu0 %467
    %vm471 = vcmask 130048
    %v472 = vsel %vm471, %v253, %v466
    %v473 = vsel %vm471, %v254, %v468
    %vm474 = vcmask 261120
    %475 = vst.msk [vmem:[#allocation2] sm:$0xff] %vm474, %v472
    %476 = vst.msk [vmem:[#allocation2 + $0x8] sm:$0xff] %vm474, %v473
    // Predicated region
    $region10: #{tpu_custom_call.1} parent=1 // pred_check
      _
    $region11: #{tpu_custom_call.1} parent=1 // pred_check_branch
      %478 = sbr.rel (0) target = $region13
    $region12: #{tpu_custom_call.1} parent=1 // pred_region
      %s480 = ssub.s32 256, 256
      %481 = vsyncadd [#allocation3], %s480
      %s482 = sshll.u32 [#allocation2], 4
      %s483 = int_to_ptr.vmem [resolvable:$true] %s482
      %488 = dma.vmem_to_hbm [thread:$0]  %s483, 256, %s2, [#allocation3], 128, 128, 8
    $region13: #{tpu_custom_call.1} parent=1 // pred_fallthru
      _
    // Predicated region
    $region14: #{tpu_custom_call.1} parent=1 // pred_check
      _
    $region15: #{tpu_custom_call.1} parent=1 // pred_check_branch
      %490 = sbr.rel (0) target = $region17
    $region16: #{tpu_custom_call.1} parent=1 // pred_region
      %491 = dma.done [#allocation3], 256
    $region17: #{tpu_custom_call.1} parent=1 // pred_fallthru
      _
    %492 = vsyncpa [#allocation3], 1

</llo_original>
